<compile_context>
chip_gen: v5e
topology: v5e:2x2
jax: 0.10.0
libtpu: 0.0.40
codegen_flags: <defaults>
</compile_context>

<pallas_src>
import functools

import jax
import jax.numpy as jnp
from jax.experimental import pallas as pl
from jax.experimental.pallas import tpu as pltpu


def _pos_enc_eval_kernel(x_ref, pe_ref, o_ref):
    # x_ref: (TB, L*D) rows, pe_ref: (1, L*D) broadcast over rows.
    o_ref[...] = (x_ref[...] + pe_ref[...]).astype(o_ref.dtype)


def _pos_enc_train_kernel(x_ref, pe_ref, bits_ref, o_ref, *, threshold, scale):
    # Fused add + inverted dropout.  keep with prob (1 - p):
    #   P(bits >= round(p * 2^32)) = 1 - p
    y = x_ref[...] + pe_ref[...]
    keep = bits_ref[...] >= jnp.uint32(threshold)
    o_ref[...] = jnp.where(keep, y * scale, jnp.zeros_like(y)).astype(o_ref.dtype)


def _row_tile(n_rows, row_bytes, budget_bytes=2 << 20):
    """Largest row tile whose block stays under ~budget_bytes.

    Returns either the full row count or a multiple of 8 (TPU sublane rule).
    """
    rows = max(1, budget_bytes // max(1, row_bytes))
    if rows >= n_rows:
        return n_rows
    rows = (rows // 8) * 8
    if rows == 0:
        # Single row already exceeds the soft budget; fall back to 8 rows.
        # TODO(synk): add an inner L*D grid axis for very large L*d_model.
        return min(8, n_rows)
    return rows


def positional_encoding(x, position_embedding, index=None, *,
                        p=0.1, training=False, dropout_key=None):
    """Equivalent of PositionalEncoding.forward(input_data, index)."""
    B, L, D = x.shape
    if index is None:
        index = jnp.arange(L)
    # Row gather (glue) — same semantics as position_embedding[index]
    pe = position_embedding[index].astype(x.dtype)            # (L, D)

    # Lane-dense flattening: last dim L*D maps to the 128-lane axis as a full
    # (or 128-multiple) extent → unmasked stores.
    LD = L * D
    x2 = x.reshape(B, LD)
    pe2 = pe.reshape(1, LD)

    itemsize = x.dtype.itemsize
    tb = _row_tile(B, LD * itemsize)
    grid = (pl.cdiv(B, tb),)

    row_spec = pl.BlockSpec((tb, LD), lambda i: (i, 0))
    pe_spec = pl.BlockSpec((1, LD), lambda i: (0, 0))

    use_dropout = training and p > 0.0
    if use_dropout:
        if dropout_key is None:
            dropout_key = jax.random.PRNGKey(0)
        bits = jax.random.bits(dropout_key, (B, LD), dtype=jnp.uint32)
        threshold = min(int(round(p * float(2 ** 32))), 2 ** 32 - 1)
        kernel = functools.partial(_pos_enc_train_kernel,
                                   threshold=threshold,
                                   scale=float(1.0 / (1.0 - p)))
        inputs = (x2, pe2, bits)
        in_specs = [row_spec, pe_spec, row_spec]
        n_big_streams = 3          # x block, bits block, out block
    else:
        kernel = _pos_enc_eval_kernel
        inputs = (x2, pe2)
        in_specs = [row_spec, pe_spec]
        n_big_streams = 2          # x block, out block

    # VMEM budget: double-buffered big streams + resident pe, with 2x headroom,
    # floored at 16 MiB and capped at 48 MiB (safe for v7x's 64 MiB VMEM).
    block_bytes = tb * LD * itemsize
    vmem_need = 2 * n_big_streams * block_bytes + 2 * LD * itemsize
    vmem_limit = int(min(48 << 20, max(16 << 20, 2 * vmem_need)))

    out2 = pl.pallas_call(
        kernel,
        out_shape=jax.ShapeDtypeStruct((B, LD), x.dtype),
        grid_spec=pltpu.PrefetchScalarGridSpec(
            num_scalar_prefetch=0,
            grid=grid,
            in_specs=in_specs,
            out_specs=row_spec,
        ),
        compiler_params=pltpu.CompilerParams(
            dimension_semantics=("parallel",),        # independent rows; dual-TC on v7x
            vmem_limit_bytes=vmem_limit,
        ),
    )(*inputs)
    return out2.reshape(B, L, D)


if __name__ == "__main__":
    # Deterministic parameter / input construction (small shapes).
    d_model = 32
    max_len = 64
    B, L = 2, 8

    key = jax.random.PRNGKey(0)
    k_pe, k_x, k_drop = jax.random.split(key, 3)
    position_embedding = 0.02 * jax.random.normal(
        k_pe, (max_len, d_model), dtype=jnp.float32)          # nn.Parameter(max_len, d_model)
    x = jax.random.normal(k_x, (B, L, d_model), dtype=jnp.float32)

    # Reference (eval mode: dropout == identity).
    ref = x + position_embedding[jnp.arange(L)][None, :, :]

    # Eval-mode forward: deterministic, check vs reference.
    out = positional_encoding(x, position_embedding, p=0.1, training=False)
    out = jax.block_until_ready(out)
    assert out.shape == (B, L, d_model)
    assert jnp.allclose(out, ref, atol=1e-6), "mismatch vs reference add"

    # Training-mode forward exercises the fused add + dropout path.
    p = 0.1
    out_train = positional_encoding(x, position_embedding, p=p,
                                    training=True, dropout_key=k_drop)
    out_train = jax.block_until_ready(out_train)
    assert out_train.shape == (B, L, d_model)
    # Every element is either dropped (0) or kept and scaled by 1/(1-p).
    scaled = ref * (1.0 / (1.0 - p))
    is_kept = jnp.isclose(out_train, scaled, rtol=1e-5, atol=1e-6)
    is_dropped = out_train == 0.0
    assert bool(jnp.all(is_kept | is_dropped)), "dropout output structure wrong"

    print("KERNEL_OK")
</pallas_src>

<mosaic_0001>
module attributes {stable_mosaic.version = 11 : i64} {
  func.func @_pos_enc_eval_kernel(%arg0: i32, %arg1: memref<2x256xf32, #tpu.memory_space<vmem>>, %arg2: memref<1x256xf32, #tpu.memory_space<vmem>>, %arg3: memref<2x256xf32, #tpu.memory_space<vmem>>) attributes {dimension_semantics = [#tpu.dimension_semantics<parallel>], iteration_bounds = array<i64: 1>, scalar_prefetch = 0 : i64, scratch_operands = 0 : i64, tpu.core_type = #tpu.core_type<tc>, window_params = [{transform_indices = @transform_0, window_bounds = array<i64: 2, 256>}, {pipeline_mode = #tpu.pipeline_mode<synchronous>, transform_indices = @transform_1, window_bounds = array<i64: 1, 256>}, {transform_indices = @transform_2, window_bounds = array<i64: 2, 256>}]} {
    %c0 = arith.constant 0 : index
    %c0_0 = arith.constant 0 : index
    %0 = vector.load %arg1[%c0, %c0_0] : memref<2x256xf32, #tpu.memory_space<vmem>>, vector<2x256xf32>
    %c0_1 = arith.constant 0 : index
    %c0_2 = arith.constant 0 : index
    %1 = vector.load %arg2[%c0_1, %c0_2] : memref<1x256xf32, #tpu.memory_space<vmem>>, vector<1x256xf32>
    %2 = vector.broadcast %1 : vector<1x256xf32> to vector<2x256xf32>
    %3 = arith.addf %0, %2 : vector<2x256xf32>
    %c0_3 = arith.constant 0 : index
    %c0_4 = arith.constant 0 : index
    %4 = vector.load %arg3[%c0_3, %c0_4] : memref<2x256xf32, #tpu.memory_space<vmem>>, vector<2x256xf32>
    tpu.vector_store %arg3[%c0_3, %c0_4], %3 {strides = array<i32>} : memref<2x256xf32, #tpu.memory_space<vmem>>, vector<2x256xf32>,
    return
  }
  func.func @transform_0(%arg0: i32) -> (i32, i32) {
    %c0_i32 = arith.constant 0 : i32
    %c0_i32_0 = arith.constant 0 : i32
    return %arg0, %c0_i32 : i32, i32
  }
  func.func @transform_1(%arg0: i32) -> (i32, i32) {
    %c0_i32 = arith.constant 0 : i32
    %c0_i32_0 = arith.constant 0 : i32
    %c0_i32_1 = arith.constant 0 : i32
    return %c0_i32, %c0_i32_0 : i32, i32
  }
  func.func @transform_2(%arg0: i32) -> (i32, i32) {
    %c0_i32 = arith.constant 0 : i32
    %c0_i32_0 = arith.constant 0 : i32
    return %arg0, %c0_i32 : i32, i32
  }
}

</mosaic_0001>

<llo_original>
// kernel: tpu_custom_call.1
$region0: #{tpu_custom_call.1}
  #allocation0 [shape = 'u32[]', space=smem, size = 0x4, offset = 0x4, fixed_abs, tag = 'smem constant byte address 0x4 - core index']
  #allocation1 [shape = 'u32[72,128]{1,0:T(1,128)}', space=vmem, size = 0x9000, scoped, tag = 'internal scratch']
  %s0 = inlined_call_operand.hbm [shape: f32[2,256], index: 0, kind: input, shape index: {}]
  %s1 = inlined_call_operand.hbm [shape: f32[1,256], index: 1, kind: input, shape index: {}]
  %s2 = inlined_call_operand.hbm [shape: f32[2,256], index: 2, kind: output, shape index: {}]
  %s3 = sld [smem:[#allocation0]]
  $region26: #{tpu_custom_call.1} parent=0
    _
  %s5 = ssub.s32 1, %s3
  %s6 = scalar_select 0, %s5, %s3
  $region1: #{tpu_custom_call.1} parent=0
    #allocation2 [shape = 'u8[2048]{0}', space=vmem, size = 0x800, scoped, tag = 'input window, operand 0, single buffered']
    #allocation3 [shape = 's32[1]{0}', space=sflag, size = 0x4, scoped, tag = 'scoped memory for tpu_custom_call.1']
    #allocation4 [shape = 's32[1]{0}', space=sflag, size = 0x4, scoped, tag = 'scoped memory for tpu_custom_call.1']
    #allocation5 [shape = 'u8[1024]{0}', space=vmem, size = 0x400, scoped, tag = 'input window, operand 1, single buffered']
    #allocation6 [shape = 's32[1]{0}', space=sflag, size = 0x4, scoped, tag = 'scoped memory for tpu_custom_call.1']
    #allocation7 [shape = 'u8[2048]{0}', space=vmem, size = 0x800, scoped, tag = 'output window, operand 0, single buffered']
    %7 = vsyncpa [#allocation3], 0
    %8 = vsyncpa [#allocation6], 0
    %9 = vsyncpa [#allocation4], 0
    // Predicated region
    $region2: #{tpu_custom_call.1} parent=1 // pred_check
      _
    $region3: #{tpu_custom_call.1} parent=1 // pred_check_branch
      %11 = sbr.rel (0) target = $region5
    $region4: #{tpu_custom_call.1} parent=1 // pred_region
      %13 = vsyncadd [#allocation3], 0
      %s15 = sshll.u32 %s0, 4
      %s16 = int_to_ptr.hbm [resolvable:$true] %s15
      %s17 = sshll.u32 [#allocation2], 4
      %s18 = int_to_ptr.vmem [resolvable:$true] %s17
      %20 = dma.hbm_to_vmem [thread:$0]  %s16, 64, %s18, [#allocation3]
    $region5: #{tpu_custom_call.1} parent=1 // pred_fallthru
      _
    // Predicated region
    $region6: #{tpu_custom_call.1} parent=1 // pred_check
      _
    $region7: #{tpu_custom_call.1} parent=1 // pred_check_branch
      %22 = sbr.rel (0) target = $region9
    $region8: #{tpu_custom_call.1} parent=1 // pred_region
      %24 = vsyncadd [#allocation6], 0
      %s26 = sshll.u32 %s1, 4
      %s27 = int_to_ptr.hbm [resolvable:$true] %s26
      %s28 = sshll.u32 [#allocation5], 4
      %s29 = int_to_ptr.vmem [resolvable:$true] %s28
      %31 = dma.hbm_to_vmem [thread:$0]  %s27, 32, %s29, [#allocation6]
    $region9: #{tpu_custom_call.1} parent=1 // pred_fallthru
      _
    // Predicated region
    $region10: #{tpu_custom_call.1} parent=1 // pred_check
      _
    $region11: #{tpu_custom_call.1} parent=1 // pred_check_branch
      %33 = sbr.rel (0) target = $region13
    $region12: #{tpu_custom_call.1} parent=1 // pred_region
      %35 = dma.done [#allocation3], 64
    $region13: #{tpu_custom_call.1} parent=1 // pred_fallthru
      _
    // Predicated region
    $region14: #{tpu_custom_call.1} parent=1 // pred_check
      _
    $region15: #{tpu_custom_call.1} parent=1 // pred_check_branch
      %37 = sbr.rel (0) target = $region17
    $region16: #{tpu_custom_call.1} parent=1 // pred_region
      %39 = dma.done [#allocation6], 32
    $region17: #{tpu_custom_call.1} parent=1 // pred_fallthru
      _
    %v40 = vld [vmem:[#allocation2] sm:$0xf]
    %v41 = vld [vmem:[#allocation5] sm:$0x3]
    %v43 = vperm.slane %v41, 0
    %v44 = vperm.slane %v41, 1
    %v45 = vrot.slane %v44, 6
    %vm46 = vcmask 1041408
    %v47 = vsel %vm46, %v43, %v45
    %v49 = vadd.f32 %v40, %v47
    %50 = vst [vmem:[#allocation7] sm:$0xf] %v49
    // Predicated region
    $region18: #{tpu_custom_call.1} parent=1 // pred_check
      _
    $region19: #{tpu_custom_call.1} parent=1 // pred_check_branch
      %52 = sbr.rel (0) target = $region21
    $region20: #{tpu_custom_call.1} parent=1 // pred_region
      %54 = vsyncadd [#allocation4], 0
      %s56 = sshll.u32 [#allocation7], 4
      %s57 = int_to_ptr.vmem [resolvable:$true] %s56
      %s58 = sshll.u32 %s2, 4
      %s59 = int_to_ptr.hbm [resolvable:$true] %s58
      %61 = dma.vmem_to_hbm [thread:$0]  %s57, 64, %s59, [#allocation4]
    $region21: #{tpu_custom_call.1} parent=1 // pred_fallthru
      _
    // Predicated region
    $region22: #{tpu_custom_call.1} parent=1 // pred_check
      _
    $region23: #{tpu_custom_call.1} parent=1 // pred_check_branch
      %63 = sbr.rel (0) target = $region25
    $region24: #{tpu_custom_call.1} parent=1 // pred_region
      %65 = dma.done [#allocation4], 64
    $region25: #{tpu_custom_call.1} parent=1 // pred_fallthru
      _
    %66 = vsyncpa [#allocation3], 1
    %67 = vsyncpa [#allocation6], 1
    %68 = vsyncpa [#allocation4], 1

</llo_original>
